<compile_context>
chip_gen: v5e
topology: v5e:2x2
jax: 0.10.0
libtpu: 0.0.40
codegen_flags: <defaults>
</compile_context>

<pallas_src>
import jax
import jax.numpy as jnp
from jax.experimental import pallas as pl
from jax.experimental.pallas import tpu as pltpu


_HALF_LOG_2PI = 0.9189385332046727  # 0.5 * log(2*pi)
_SHIFT = 8                          # shift small args so Stirling converges in f32


def _lgamma_pos(z):
    """lgamma(z) for z > 0, elementwise f32.

    Shifted Stirling series. EUP cost per call: 2 logs + 1 (approx) reciprocal;
    everything else is VPU adds/muls. Valid for any z > 0 (no overflow: the
    rising-factorial product is evaluated with a clamped argument).
    """
    need_shift = z < float(_SHIFT)
    # rising factorial z*(z+1)*...*(z+7); clamp so the unused branch stays finite
    zc = jnp.minimum(z, float(_SHIFT))
    prod = zc
    for k in range(1, _SHIFT):
        prod = prod * (zc + float(k))
    prod = jnp.where(need_shift, prod, 1.0)          # log(1) == 0 when no shift
    zs = jnp.where(need_shift, z + float(_SHIFT), z)  # zs >= 8 always

    r = pl.reciprocal(zs, approx=True)                # EUP slot, cheap
    r2 = r * r
    # 1/(12 z) - 1/(360 z^3) + 1/(1260 z^5)
    corr = r * (0.08333333333333333
                - r2 * (0.002777777777777778 - r2 * 0.0007936507936507937))
    return (zs - 0.5) * jnp.log(zs) - zs + _HALF_LOG_2PI + corr - jnp.log(prod)


def _nb_loss_kernel(x_ref, mean_ref, disp_ref, scale_ref, out_ref):
    """Per-(TB, TG) tile NB negative log-likelihood, accumulated per row-tile."""
    i = pl.program_id(0)   # batch-tile index (output slot)
    j = pl.program_id(1)   # gene-tile index (reduction axis)
    eps = 1e-10

    # cast per-tile in VMEM (inputs may be bf16)
    x = x_ref[...].astype(jnp.float32)
    disp = disp_ref[...].astype(jnp.float32)
    scale = scale_ref[...].astype(jnp.float32)            # (TB, 1)
    mean = mean_ref[...].astype(jnp.float32) * scale      # broadcast over genes

    d = disp + eps
    log_d = jnp.log(d)

    t1 = _lgamma_pos(d) + _lgamma_pos(x + 1.0) - _lgamma_pos(x + d)
    # log(1 + mean/d) == log(mean + d) - log(d)
    t2 = (disp + x) * (jnp.log(mean + d) - log_d) + x * (log_d - jnp.log(mean + eps))

    tile_sum = jnp.sum(t1 + t2)    # single XLU cross-lane reduce per tile

    @pl.when(j == 0)
    def _():
        out_ref[i] = jnp.float32(0.0)

    out_ref[i] += tile_sum


def _pick_tile(n, candidates):
    for c in candidates:
        if n % c == 0:
            return c
    return n  # fall back to the full axis (always a legal block)


def nb_loss(x, mean, disp, scale_factor, *, tb=None, tg=None):
    """Pallas NBLoss. x, mean, disp: [B, G]; scale_factor: [B]. Returns scalar."""
    B, G = x.shape
    # Tiles sized so 3 double-buffered f32 inputs stay well under the scoped
    # VMEM limit on every generation (v5e 16 MiB default, v7x 64 MiB physical):
    # 256 x 1024 x 4 B x 3 inputs x 2 buffers = 6 MiB.
    tb = tb if tb is not None else _pick_tile(B, (256, 128, 64, 32, 16, 8))
    tg = tg if tg is not None else _pick_tile(G, (1024, 512, 256, 128))
    nbt, ngt = B // tb, G // tg

    scale2d = scale_factor.reshape(B, 1)

    # TODO(synk): on v7x, split the batch-tile axis across the 2 TensorCores
    # (parallel semantics + per-core partial sums) for ~2x on this EUP-bound op.
    partials = pl.pallas_call(
        _nb_loss_kernel,
        out_shape=jax.ShapeDtypeStruct((nbt,), jnp.float32),
        grid=(nbt, ngt),
        in_specs=[
            pl.BlockSpec((tb, tg), lambda i, j: (i, j)),   # x
            pl.BlockSpec((tb, tg), lambda i, j: (i, j)),   # mean
            pl.BlockSpec((tb, tg), lambda i, j: (i, j)),   # disp
            pl.BlockSpec((tb, 1), lambda i, j: (i, 0)),    # scale (broadcast col)
        ],
        out_specs=pl.BlockSpec(memory_space=pltpu.SMEM),   # (nbt,) partial sums
        compiler_params=pltpu.CompilerParams(
            dimension_semantics=("arbitrary", "arbitrary"),
            vmem_limit_bytes=32 * 1024 * 1024,
        ),
    )(x, mean, disp, scale2d)

    return jnp.sum(partials) * (1.0 / float(B * G))


# Pure-JAX reference (mirrors the PyTorch forward exactly).
def nb_loss_ref(x, mean, disp, scale_factor):
    eps = 1e-10
    mean = mean * scale_factor[:, None]
    t1 = (jax.lax.lgamma(disp + eps) + jax.lax.lgamma(x + 1.0)
          - jax.lax.lgamma(x + disp + eps))
    t2 = (disp + x) * jnp.log(1.0 + mean / (disp + eps)) \
        + x * (jnp.log(disp + eps) - jnp.log(mean + eps))
    return jnp.mean(t1 + t2)


if __name__ == "__main__":
    # NBLoss has no learnable parameters; nothing to initialize.
    B, G = 16, 512
    key = jax.random.PRNGKey(0)
    kx, km, kd, ks = jax.random.split(key, 4)

    # x: non-negative counts; mean/disp/scale_factor: positive.
    x = jnp.floor(jax.random.exponential(kx, (B, G)) * 5.0).astype(jnp.float32)
    mean = jax.random.uniform(km, (B, G), minval=0.1, maxval=10.0, dtype=jnp.float32)
    disp = jax.random.uniform(kd, (B, G), minval=0.02, maxval=4.0, dtype=jnp.float32)
    scale_factor = jax.random.uniform(ks, (B,), minval=0.5, maxval=1.5, dtype=jnp.float32)

    # Small explicit tiles so the test exercises a real (2, 2) grid with
    # cross-tile accumulation.
    out = nb_loss(x, mean, disp, scale_factor, tb=8, tg=256)
    jax.block_until_ready(out)

    ref = nb_loss_ref(x, mean, disp, scale_factor)
    assert jnp.allclose(out, ref, rtol=1e-4, atol=1e-4), (out, ref)

    print("KERNEL_OK")
</pallas_src>

<mosaic_0001>
module attributes {stable_mosaic.version = 11 : i64} {
  func.func @_nb_loss_kernel(%arg0: i32, %arg1: i32, %arg2: memref<8x256xf32, #tpu.memory_space<vmem>>, %arg3: memref<8x256xf32, #tpu.memory_space<vmem>>, %arg4: memref<8x256xf32, #tpu.memory_space<vmem>>, %arg5: memref<8x1xf32, #tpu.memory_space<vmem>>, %arg6: memref<2xf32, #tpu.memory_space<smem>>) attributes {dimension_semantics = [#tpu.dimension_semantics<arbitrary>, #tpu.dimension_semantics<arbitrary>], iteration_bounds = array<i64: 2, 2>, scalar_prefetch = 0 : i64, scratch_operands = 0 : i64, tpu.core_type = #tpu.core_type<tc>, window_params = [{transform_indices = @transform_0, window_bounds = array<i64: 8, 256>}, {transform_indices = @transform_1, window_bounds = array<i64: 8, 256>}, {transform_indices = @transform_2, window_bounds = array<i64: 8, 256>}, {transform_indices = @transform_3, window_bounds = array<i64: 8, 1>}, {transform_indices = @transform_4, window_bounds = array<i64: 2>}]} {
    %c0 = arith.constant 0 : index
    %c0_0 = arith.constant 0 : index
    %0 = vector.load %arg2[%c0, %c0_0] : memref<8x256xf32, #tpu.memory_space<vmem>>, vector<8x256xf32>
    %c0_1 = arith.constant 0 : index
    %c0_2 = arith.constant 0 : index
    %1 = vector.load %arg4[%c0_1, %c0_2] : memref<8x256xf32, #tpu.memory_space<vmem>>, vector<8x256xf32>
    %c0_3 = arith.constant 0 : index
    %c0_4 = arith.constant 0 : index
    %2 = vector.load %arg5[%c0_3, %c0_4] : memref<8x1xf32, #tpu.memory_space<vmem>>, vector<8x1xf32>
    %c0_5 = arith.constant 0 : index
    %c0_6 = arith.constant 0 : index
    %3 = vector.load %arg3[%c0_5, %c0_6] : memref<8x256xf32, #tpu.memory_space<vmem>>, vector<8x256xf32>
    %4 = vector.broadcast %2 : vector<8x1xf32> to vector<8x256xf32>
    %5 = arith.mulf %3, %4 : vector<8x256xf32>
    %cst = arith.constant 1.000000e-10 : f32
    %6 = vector.broadcast %cst : f32 to vector<8x256xf32>
    %7 = arith.addf %1, %6 : vector<8x256xf32>
    %8 = math.log %7 : vector<8x256xf32>
    %cst_7 = arith.constant 8.000000e+00 : f32
    %9 = vector.broadcast %cst_7 : f32 to vector<8x256xf32>
    %10 = arith.cmpf olt, %7, %9 : vector<8x256xf32>
    %cst_8 = arith.constant 8.000000e+00 : f32
    %11 = vector.broadcast %cst_8 : f32 to vector<8x256xf32>
    %12 = arith.minimumf %7, %11 : vector<8x256xf32>
    %cst_9 = arith.constant 1.000000e+00 : f32
    %13 = vector.broadcast %cst_9 : f32 to vector<8x256xf32>
    %14 = arith.addf %12, %13 : vector<8x256xf32>
    %15 = arith.mulf %12, %14 : vector<8x256xf32>
    %cst_10 = arith.constant 2.000000e+00 : f32
    %16 = vector.broadcast %cst_10 : f32 to vector<8x256xf32>
    %17 = arith.addf %12, %16 : vector<8x256xf32>
    %18 = arith.mulf %15, %17 : vector<8x256xf32>
    %cst_11 = arith.constant 3.000000e+00 : f32
    %19 = vector.broadcast %cst_11 : f32 to vector<8x256xf32>
    %20 = arith.addf %12, %19 : vector<8x256xf32>
    %21 = arith.mulf %18, %20 : vector<8x256xf32>
    %cst_12 = arith.constant 4.000000e+00 : f32
    %22 = vector.broadcast %cst_12 : f32 to vector<8x256xf32>
    %23 = arith.addf %12, %22 : vector<8x256xf32>
    %24 = arith.mulf %21, %23 : vector<8x256xf32>
    %cst_13 = arith.constant 5.000000e+00 : f32
    %25 = vector.broadcast %cst_13 : f32 to vector<8x256xf32>
    %26 = arith.addf %12, %25 : vector<8x256xf32>
    %27 = arith.mulf %24, %26 : vector<8x256xf32>
    %cst_14 = arith.constant 6.000000e+00 : f32
    %28 = vector.broadcast %cst_14 : f32 to vector<8x256xf32>
    %29 = arith.addf %12, %28 : vector<8x256xf32>
    %30 = arith.mulf %27, %29 : vector<8x256xf32>
    %cst_15 = arith.constant 7.000000e+00 : f32
    %31 = vector.broadcast %cst_15 : f32 to vector<8x256xf32>
    %32 = arith.addf %12, %31 : vector<8x256xf32>
    %33 = arith.mulf %30, %32 : vector<8x256xf32>
    %cst_16 = arith.constant 1.000000e+00 : f32
    %34 = vector.broadcast %cst_16 : f32 to vector<8x256xf32>
    %35 = arith.select %10, %33, %34 : vector<8x256xi1>, vector<8x256xf32>
    %cst_17 = arith.constant 8.000000e+00 : f32
    %36 = vector.broadcast %cst_17 : f32 to vector<8x256xf32>
    %37 = arith.addf %7, %36 : vector<8x256xf32>
    %38 = arith.select %10, %37, %7 : vector<8x256xi1>, vector<8x256xf32>
    %39 = tpu.reciprocal %38 {approx = true} : vector<8x256xf32> -> vector<8x256xf32>
    %40 = arith.mulf %39, %39 : vector<8x256xf32>
    %cst_18 = arith.constant 7.93650805E-4 : f32
    %41 = vector.broadcast %cst_18 : f32 to vector<8x256xf32>
    %42 = arith.mulf %40, %41 : vector<8x256xf32>
    %cst_19 = arith.constant 0.00277777785 : f32
    %43 = vector.broadcast %cst_19 : f32 to vector<8x256xf32>
    %44 = arith.subf %43, %42 : vector<8x256xf32>
    %45 = arith.mulf %40, %44 : vector<8x256xf32>
    %cst_20 = arith.constant 0.0833333358 : f32
    %46 = vector.broadcast %cst_20 : f32 to vector<8x256xf32>
    %47 = arith.subf %46, %45 : vector<8x256xf32>
    %48 = arith.mulf %39, %47 : vector<8x256xf32>
    %cst_21 = arith.constant 5.000000e-01 : f32
    %49 = vector.broadcast %cst_21 : f32 to vector<8x256xf32>
    %50 = arith.subf %38, %49 : vector<8x256xf32>
    %51 = math.log %38 : vector<8x256xf32>
    %52 = arith.mulf %50, %51 : vector<8x256xf32>
    %53 = arith.subf %52, %38 : vector<8x256xf32>
    %cst_22 = arith.constant 0.918938517 : f32
    %54 = vector.broadcast %cst_22 : f32 to vector<8x256xf32>
    %55 = arith.addf %53, %54 : vector<8x256xf32>
    %56 = arith.addf %55, %48 : vector<8x256xf32>
    %57 = math.log %35 : vector<8x256xf32>
    %58 = arith.subf %56, %57 : vector<8x256xf32>
    %cst_23 = arith.constant 1.000000e+00 : f32
    %59 = vector.broadcast %cst_23 : f32 to vector<8x256xf32>
    %60 = arith.addf %0, %59 : vector<8x256xf32>
    %cst_24 = arith.constant 8.000000e+00 : f32
    %61 = vector.broadcast %cst_24 : f32 to vector<8x256xf32>
    %62 = arith.cmpf olt, %60, %61 : vector<8x256xf32>
    %cst_25 = arith.constant 8.000000e+00 : f32
    %63 = vector.broadcast %cst_25 : f32 to vector<8x256xf32>
    %64 = arith.minimumf %60, %63 : vector<8x256xf32>
    %cst_26 = arith.constant 1.000000e+00 : f32
    %65 = vector.broadcast %cst_26 : f32 to vector<8x256xf32>
    %66 = arith.addf %64, %65 : vector<8x256xf32>
    %67 = arith.mulf %64, %66 : vector<8x256xf32>
    %cst_27 = arith.constant 2.000000e+00 : f32
    %68 = vector.broadcast %cst_27 : f32 to vector<8x256xf32>
    %69 = arith.addf %64, %68 : vector<8x256xf32>
    %70 = arith.mulf %67, %69 : vector<8x256xf32>
    %cst_28 = arith.constant 3.000000e+00 : f32
    %71 = vector.broadcast %cst_28 : f32 to vector<8x256xf32>
    %72 = arith.addf %64, %71 : vector<8x256xf32>
    %73 = arith.mulf %70, %72 : vector<8x256xf32>
    %cst_29 = arith.constant 4.000000e+00 : f32
    %74 = vector.broadcast %cst_29 : f32 to vector<8x256xf32>
    %75 = arith.addf %64, %74 : vector<8x256xf32>
    %76 = arith.mulf %73, %75 : vector<8x256xf32>
    %cst_30 = arith.constant 5.000000e+00 : f32
    %77 = vector.broadcast %cst_30 : f32 to vector<8x256xf32>
    %78 = arith.addf %64, %77 : vector<8x256xf32>
    %79 = arith.mulf %76, %78 : vector<8x256xf32>
    %cst_31 = arith.constant 6.000000e+00 : f32
    %80 = vector.broadcast %cst_31 : f32 to vector<8x256xf32>
    %81 = arith.addf %64, %80 : vector<8x256xf32>
    %82 = arith.mulf %79, %81 : vector<8x256xf32>
    %cst_32 = arith.constant 7.000000e+00 : f32
    %83 = vector.broadcast %cst_32 : f32 to vector<8x256xf32>
    %84 = arith.addf %64, %83 : vector<8x256xf32>
    %85 = arith.mulf %82, %84 : vector<8x256xf32>
    %cst_33 = arith.constant 1.000000e+00 : f32
    %86 = vector.broadcast %cst_33 : f32 to vector<8x256xf32>
    %87 = arith.select %62, %85, %86 : vector<8x256xi1>, vector<8x256xf32>
    %cst_34 = arith.constant 8.000000e+00 : f32
    %88 = vector.broadcast %cst_34 : f32 to vector<8x256xf32>
    %89 = arith.addf %60, %88 : vector<8x256xf32>
    %90 = arith.select %62, %89, %60 : vector<8x256xi1>, vector<8x256xf32>
    %91 = tpu.reciprocal %90 {approx = true} : vector<8x256xf32> -> vector<8x256xf32>
    %92 = arith.mulf %91, %91 : vector<8x256xf32>
    %cst_35 = arith.constant 7.93650805E-4 : f32
    %93 = vector.broadcast %cst_35 : f32 to vector<8x256xf32>
    %94 = arith.mulf %92, %93 : vector<8x256xf32>
    %cst_36 = arith.constant 0.00277777785 : f32
    %95 = vector.broadcast %cst_36 : f32 to vector<8x256xf32>
    %96 = arith.subf %95, %94 : vector<8x256xf32>
    %97 = arith.mulf %92, %96 : vector<8x256xf32>
    %cst_37 = arith.constant 0.0833333358 : f32
    %98 = vector.broadcast %cst_37 : f32 to vector<8x256xf32>
    %99 = arith.subf %98, %97 : vector<8x256xf32>
    %100 = arith.mulf %91, %99 : vector<8x256xf32>
    %cst_38 = arith.constant 5.000000e-01 : f32
    %101 = vector.broadcast %cst_38 : f32 to vector<8x256xf32>
    %102 = arith.subf %90, %101 : vector<8x256xf32>
    %103 = math.log %90 : vector<8x256xf32>
    %104 = arith.mulf %102, %103 : vector<8x256xf32>
    %105 = arith.subf %104, %90 : vector<8x256xf32>
    %cst_39 = arith.constant 0.918938517 : f32
    %106 = vector.broadcast %cst_39 : f32 to vector<8x256xf32>
    %107 = arith.addf %105, %106 : vector<8x256xf32>
    %108 = arith.addf %107, %100 : vector<8x256xf32>
    %109 = math.log %87 : vector<8x256xf32>
    %110 = arith.subf %108, %109 : vector<8x256xf32>
    %111 = arith.addf %58, %110 : vector<8x256xf32>
    %112 = arith.addf %0, %7 : vector<8x256xf32>
    %cst_40 = arith.constant 8.000000e+00 : f32
    %113 = vector.broadcast %cst_40 : f32 to vector<8x256xf32>
    %114 = arith.cmpf olt, %112, %113 : vector<8x256xf32>
    %cst_41 = arith.constant 8.000000e+00 : f32
    %115 = vector.broadcast %cst_41 : f32 to vector<8x256xf32>
    %116 = arith.minimumf %112, %115 : vector<8x256xf32>
    %cst_42 = arith.constant 1.000000e+00 : f32
    %117 = vector.broadcast %cst_42 : f32 to vector<8x256xf32>
    %118 = arith.addf %116, %117 : vector<8x256xf32>
    %119 = arith.mulf %116, %118 : vector<8x256xf32>
    %cst_43 = arith.constant 2.000000e+00 : f32
    %120 = vector.broadcast %cst_43 : f32 to vector<8x256xf32>
    %121 = arith.addf %116, %120 : vector<8x256xf32>
    %122 = arith.mulf %119, %121 : vector<8x256xf32>
    %cst_44 = arith.constant 3.000000e+00 : f32
    %123 = vector.broadcast %cst_44 : f32 to vector<8x256xf32>
    %124 = arith.addf %116, %123 : vector<8x256xf32>
    %125 = arith.mulf %122, %124 : vector<8x256xf32>
    %cst_45 = arith.constant 4.000000e+00 : f32
    %126 = vector.broadcast %cst_45 : f32 to vector<8x256xf32>
    %127 = arith.addf %116, %126 : vector<8x256xf32>
    %128 = arith.mulf %125, %127 : vector<8x256xf32>
    %cst_46 = arith.constant 5.000000e+00 : f32
    %129 = vector.broadcast %cst_46 : f32 to vector<8x256xf32>
    %130 = arith.addf %116, %129 : vector<8x256xf32>
    %131 = arith.mulf %128, %130 : vector<8x256xf32>
    %cst_47 = arith.constant 6.000000e+00 : f32
    %132 = vector.broadcast %cst_47 : f32 to vector<8x256xf32>
    %133 = arith.addf %116, %132 : vector<8x256xf32>
    %134 = arith.mulf %131, %133 : vector<8x256xf32>
    %cst_48 = arith.constant 7.000000e+00 : f32
    %135 = vector.broadcast %cst_48 : f32 to vector<8x256xf32>
    %136 = arith.addf %116, %135 : vector<8x256xf32>
    %137 = arith.mulf %134, %136 : vector<8x256xf32>
    %cst_49 = arith.constant 1.000000e+00 : f32
    %138 = vector.broadcast %cst_49 : f32 to vector<8x256xf32>
    %139 = arith.select %114, %137, %138 : vector<8x256xi1>, vector<8x256xf32>
    %cst_50 = arith.constant 8.000000e+00 : f32
    %140 = vector.broadcast %cst_50 : f32 to vector<8x256xf32>
    %141 = arith.addf %112, %140 : vector<8x256xf32>
    %142 = arith.select %114, %141, %112 : vector<8x256xi1>, vector<8x256xf32>
    %143 = tpu.reciprocal %142 {approx = true} : vector<8x256xf32> -> vector<8x256xf32>
    %144 = arith.mulf %143, %143 : vector<8x256xf32>
    %cst_51 = arith.constant 7.93650805E-4 : f32
    %145 = vector.broadcast %cst_51 : f32 to vector<8x256xf32>
    %146 = arith.mulf %144, %145 : vector<8x256xf32>
    %cst_52 = arith.constant 0.00277777785 : f32
    %147 = vector.broadcast %cst_52 : f32 to vector<8x256xf32>
    %148 = arith.subf %147, %146 : vector<8x256xf32>
    %149 = arith.mulf %144, %148 : vector<8x256xf32>
    %cst_53 = arith.constant 0.0833333358 : f32
    %150 = vector.broadcast %cst_53 : f32 to vector<8x256xf32>
    %151 = arith.subf %150, %149 : vector<8x256xf32>
    %152 = arith.mulf %143, %151 : vector<8x256xf32>
    %cst_54 = arith.constant 5.000000e-01 : f32
    %153 = vector.broadcast %cst_54 : f32 to vector<8x256xf32>
    %154 = arith.subf %142, %153 : vector<8x256xf32>
    %155 = math.log %142 : vector<8x256xf32>
    %156 = arith.mulf %154, %155 : vector<8x256xf32>
    %157 = arith.subf %156, %142 : vector<8x256xf32>
    %cst_55 = arith.constant 0.918938517 : f32
    %158 = vector.broadcast %cst_55 : f32 to vector<8x256xf32>
    %159 = arith.addf %157, %158 : vector<8x256xf32>
    %160 = arith.addf %159, %152 : vector<8x256xf32>
    %161 = math.log %139 : vector<8x256xf32>
    %162 = arith.subf %160, %161 : vector<8x256xf32>
    %163 = arith.subf %111, %162 : vector<8x256xf32>
    %164 = arith.addf %1, %0 : vector<8x256xf32>
    %165 = arith.addf %5, %7 : vector<8x256xf32>
    %166 = math.log %165 : vector<8x256xf32>
    %167 = arith.subf %166, %8 : vector<8x256xf32>
    %168 = arith.mulf %164, %167 : vector<8x256xf32>
    %cst_56 = arith.constant 1.000000e-10 : f32
    %169 = vector.broadcast %cst_56 : f32 to vector<8x256xf32>
    %170 = arith.addf %5, %169 : vector<8x256xf32>
    %171 = math.log %170 : vector<8x256xf32>
    %172 = arith.subf %8, %171 : vector<8x256xf32>
    %173 = arith.mulf %0, %172 : vector<8x256xf32>
    %174 = arith.addf %168, %173 : vector<8x256xf32>
    %175 = arith.addf %163, %174 : vector<8x256xf32>
    %176 = vector.shape_cast %175 : vector<8x256xf32> to vector<1x8x256xf32>
    %cst_57 = arith.constant dense<0.000000e+00> : vector<1xf32>
    %177 = vector.multi_reduction <add>, %176, %cst_57 [1, 2] : vector<1x8x256xf32> to vector<1xf32>
    %178 = vector.shape_cast %177 : vector<1xf32> to vector<1x1x1xf32>
    %179 = vector.extract %178[0, 0, 0] : f32 from vector<1x1x1xf32>
    %c0_i32 = arith.constant 0 : i32
    %180 = arith.cmpi eq, %arg1, %c0_i32 : i32
    %181 = arith.extui %180 : i1 to i32
    %c0_i32_58 = arith.constant 0 : i32
    %182 = arith.cmpi ne, %181, %c0_i32_58 : i32
    scf.if %182 {
      %cst_59 = arith.constant 0.000000e+00 : f32
      %188 = arith.index_cast %arg0 : i32 to index
      %189 = memref.load %arg6[%188] : memref<2xf32, #tpu.memory_space<smem>>
      memref.store %cst_59, %arg6[%188] : memref<2xf32, #tpu.memory_space<smem>>
    } else {
    }
    %183 = arith.index_cast %arg0 : i32 to index
    %184 = memref.load %arg6[%183] : memref<2xf32, #tpu.memory_space<smem>>
    %185 = arith.addf %184, %179 : f32
    %186 = arith.index_cast %arg0 : i32 to index
    %187 = memref.load %arg6[%186] : memref<2xf32, #tpu.memory_space<smem>>
    memref.store %185, %arg6[%186] : memref<2xf32, #tpu.memory_space<smem>>
    return
  }
  func.func @transform_0(%arg0: i32, %arg1: i32) -> (i32, i32) {
    %c0_i32 = arith.constant 0 : i32
    return %arg0, %arg1 : i32, i32
  }
  func.func @transform_1(%arg0: i32, %arg1: i32) -> (i32, i32) {
    %c0_i32 = arith.constant 0 : i32
    return %arg0, %arg1 : i32, i32
  }
  func.func @transform_2(%arg0: i32, %arg1: i32) -> (i32, i32) {
    %c0_i32 = arith.constant 0 : i32
    return %arg0, %arg1 : i32, i32
  }
  func.func @transform_3(%arg0: i32, %arg1: i32) -> (i32, i32) {
    %c0_i32 = arith.constant 0 : i32
    %c0_i32_0 = arith.constant 0 : i32
    return %arg0, %c0_i32 : i32, i32
  }
  func.func @transform_4(%arg0: i32, %arg1: i32) -> i32 {
    %c0_i32 = arith.constant 0 : i32
    %c0_i32_0 = arith.constant 0 : i32
    return %c0_i32 : i32
  }
}

</mosaic_0001>

<llo_original>
// kernel: tpu_custom_call.1
$region0: #{tpu_custom_call.1}
  #allocation0 [shape = 'u32[]', space=smem, size = 0x4, offset = 0x4, fixed_abs, tag = 'smem constant byte address 0x4 - core index']
  #allocation1 [shape = 'u32[72,128]{1,0:T(1,128)}', space=vmem, size = 0x9000, scoped, tag = 'internal scratch']
  %s0 = inlined_call_operand.hbm [shape: f32[16,512], index: 0, kind: input, shape index: {}]
  %s1 = inlined_call_operand.hbm [shape: f32[16,512], index: 1, kind: input, shape index: {}]
  %s2 = inlined_call_operand.hbm [shape: f32[16,512], index: 2, kind: input, shape index: {}]
  %s3 = inlined_call_operand.vmem [shape: f32[16,1], index: 3, kind: input, shape index: {}]
  %s4 = inlined_call_operand.hbm [shape: f32[2], index: 4, kind: output, shape index: {}]
  %s5 = sld [smem:[#allocation0]]
  $region65: #{tpu_custom_call.1} parent=0
    _
  %s7 = ssub.s32 1, %s5
  %s8 = scalar_select 0, %s7, %s5
  $region1: #{tpu_custom_call.1} parent=0
    #allocation2 [shape = 'u8[16384]{0}', space=vmem, size = 0x4000, scoped, tag = 'input window, operand 0']
    #allocation3 [shape = 's32[2]{0}', space=sflag, size = 0x8, scoped, tag = 'scoped memory for tpu_custom_call.1']
    #allocation4 [shape = 's32[2]{0}', space=sflag, size = 0x8, scoped, tag = 'scoped memory for tpu_custom_call.1']
    #allocation5 [shape = 'u8[16384]{0}', space=vmem, size = 0x4000, scoped, tag = 'input window, operand 1']
    #allocation6 [shape = 's32[2]{0}', space=sflag, size = 0x8, scoped, tag = 'scoped memory for tpu_custom_call.1']
    #allocation7 [shape = 'u8[16384]{0}', space=vmem, size = 0x4000, scoped, tag = 'input window, operand 2']
    #allocation8 [shape = 'u8[512]{0}', space=smem, size = 0x200, scoped, tag = 'output window, operand 0, single buffered']
    %9 = vsyncpa [#allocation3], 0
    %s10 = scalar_lea.sflag [#allocation3], 1
    %11 = vsyncpa %s10, 0
    %12 = vsyncpa [#allocation6], 0
    %s13 = scalar_lea.sflag [#allocation6], 1
    %14 = vsyncpa %s13, 0
    %15 = vsyncpa [#allocation4], 0
    loop: start=0, step=1, limit=6
    $region2: #{tpu_custom_call.1} parent=1 // loop_pre_header
      _
    $region3: #{tpu_custom_call.1} parent=1 // loop_header
      %s17 = sphi 0, %s21
      %p18 = scmp.ge.s32.totalorder %s17, 6
      %s24 = sphi 0, %s36
      %s25 = sphi 0, %s32
      %s26 = sphi 0, %s24
      %s27 = sphi 0, %s25
      %s28 = sphi 0, %s26
      %s29 = sphi 0, %s27
      %s41 = sphi 0, %s43
      %s44 = sphi 0, %s41
      %s45 = sphi 0, %s44
      %s61 = sphi 0, %s45
      %s69 = sphi 0, %s71
      %s72 = sphi 0, %s69
      %s73 = sphi 0, %s72
      %s89 = sphi 0, %s73
      %s97 = sphi 0, %s99
      %s100 = sphi 0, %s97
      %s101 = sphi 0, %s100
      %s117 = sphi 0, %s101
      %s123 = sphi 0, %s125
      %s126 = sphi 0, %s123
      %s127 = sphi 0, %s126
      %s143 = sphi 0, %s127
      %s147 = sphi 0, %s147
      %s149 = sphi 0, %s147
      %s150 = sphi 0, %s149
      %s164 = sphi 0, %s150
    $region4: #{tpu_custom_call.1} parent=1 // loop_header_branch
      %20 = sbr.rel (%p18) target = $region8
    $region5: #{tpu_custom_call.1} parent=1 // loop_body
      %s22 = ssub.s32 %s17, 1
      %s23 = ssub.s32 %s17, 2
      %s30 = sadd.s32 1, %s25
      %p31 = scmp.ge.s32.totalorder %s30, 2
      %s32 = scalar_select %p31, 0, %s30
      %s33 = sadd.s32 1, %s24
      %s34 = scalar_select %p31, %s33, %s24
      %p35 = scmp.ge.s32.totalorder %s34, 2
      %s36 = scalar_select %p35, 0, %s34
      %s37 = ssub.s32 %s24, %s36
      %s38 = ssub.s32 %s25, %s32
      %s39 = sor.u32 %s37, %s38
      %p40 = scmp.eq.s32.totalorder %s39, 0
      %s42 = sadd.s32 %s41, 1
      %s43 = scalar_select %p40, %s41, %s42
      %p46 = pneg %p40
      %p47 = scmp.eq.s32.totalorder %s17, 3
      %p48 = por %p46, %p47
      %p49 = scmp.ne.s32.totalorder %s41, %s44
      %p50 = scmp.eq.s32.totalorder %s17, 0
      %p51 = por %p49, %p50
      %p52 = scmp.ne.s32.totalorder %s41, %s44
      %p53 = scmp.eq.s32.totalorder %s22, 3
      %p54 = por %p52, %p53
      %p55 = scmp.ne.s32.totalorder %s44, %s45
      %p56 = scmp.eq.s32.totalorder %s22, 0
      %p57 = por %p55, %p56
      %p58 = scmp.ne.s32.totalorder %s44, %s45
      %p59 = scmp.eq.s32.totalorder %s23, 3
      %p60 = por %p58, %p59
      %p62 = scmp.ne.s32.totalorder %s45, %s61
      %p63 = scmp.eq.s32.totalorder %s23, 0
      %p64 = por %p62, %p63
      %s65 = ssub.s32 %s24, %s36
      %s66 = ssub.s32 %s25, %s32
      %s67 = sor.u32 %s65, %s66
      %p68 = scmp.eq.s32.totalorder %s67, 0
      %s70 = sadd.s32 %s69, 1
      %s71 = scalar_select %p68, %s69, %s70
      %p74 = pneg %p68
      %p75 = scmp.eq.s32.totalorder %s17, 3
      %p76 = por %p74, %p75
      %p77 = scmp.ne.s32.totalorder %s69, %s72
      %p78 = scmp.eq.s32.totalorder %s17, 0
      %p79 = por %p77, %p78
      %p80 = scmp.ne.s32.totalorder %s69, %s72
      %p81 = scmp.eq.s32.totalorder %s22, 3
      %p82 = por %p80, %p81
      %p83 = scmp.ne.s32.totalorder %s72, %s73
      %p84 = scmp.eq.s32.totalorder %s22, 0
      %p85 = por %p83, %p84
      %p86 = scmp.ne.s32.totalorder %s72, %s73
      %p87 = scmp.eq.s32.totalorder %s23, 3
      %p88 = por %p86, %p87
      %p90 = scmp.ne.s32.totalorder %s73, %s89
      %p91 = scmp.eq.s32.totalorder %s23, 0
      %p92 = por %p90, %p91
      %s93 = ssub.s32 %s24, %s36
      %s94 = ssub.s32 %s25, %s32
      %s95 = sor.u32 %s93, %s94
      %p96 = scmp.eq.s32.totalorder %s95, 0
      %s98 = sadd.s32 %s97, 1
      %s99 = scalar_select %p96, %s97, %s98
      %p102 = pneg %p96
      %p103 = scmp.eq.s32.totalorder %s17, 3
      %p104 = por %p102, %p103
      %p105 = scmp.ne.s32.totalorder %s97, %s100
      %p106 = scmp.eq.s32.totalorder %s17, 0
      %p107 = por %p105, %p106
      %p108 = scmp.ne.s32.totalorder %s97, %s100
      %p109 = scmp.eq.s32.totalorder %s22, 3
      %p110 = por %p108, %p109
      %p111 = scmp.ne.s32.totalorder %s100, %s101
      %p112 = scmp.eq.s32.totalorder %s22, 0
      %p113 = por %p111, %p112
      %p114 = scmp.ne.s32.totalorder %s100, %s101
      %p115 = scmp.eq.s32.totalorder %s23, 3
      %p116 = por %p114, %p115
      %p118 = scmp.ne.s32.totalorder %s101, %s117
      %p119 = scmp.eq.s32.totalorder %s23, 0
      %p120 = por %p118, %p119
      %s121 = ssub.s32 %s24, %s36
      %p122 = scmp.eq.s32.totalorder %s121, 0
      %s124 = sadd.s32 %s123, 1
      %s125 = scalar_select %p122, %s123, %s124
      %p128 = pneg %p122
      %p129 = scmp.eq.s32.totalorder %s17, 3
      %p130 = por %p128, %p129
      %p131 = scmp.ne.s32.totalorder %s123, %s126
      %p132 = scmp.eq.s32.totalorder %s17, 0
      %p133 = por %p131, %p132
      %p134 = scmp.ne.s32.totalorder %s123, %s126
      %p135 = scmp.eq.s32.totalorder %s22, 3
      %p136 = por %p134, %p135
      %p137 = scmp.ne.s32.totalorder %s126, %s127
      %p138 = scmp.eq.s32.totalorder %s22, 0
      %p139 = por %p137, %p138
      %p140 = scmp.ne.s32.totalorder %s126, %s127
      %p141 = scmp.eq.s32.totalorder %s23, 3
      %p142 = por %p140, %p141
      %p144 = scmp.ne.s32.totalorder %s127, %s143
      %p145 = scmp.eq.s32.totalorder %s23, 0
      %p146 = por %p144, %p145
      %s148 = sadd.s32 %s147, 1
      %p151 = scmp.eq.s32.totalorder %s17, 3
      %p152 = scmp.ne.s32.totalorder %s147, %s149
      %p153 = scmp.eq.s32.totalorder %s17, 0
      %p154 = por %p152, %p153
      %p155 = scmp.ne.s32.totalorder %s147, %s149
      %p156 = scmp.eq.s32.totalorder %s22, 3
      %p157 = por %p155, %p156
      %p158 = scmp.ne.s32.totalorder %s149, %s150
      %p159 = scmp.eq.s32.totalorder %s22, 0
      %p160 = por %p158, %p159
      %p161 = scmp.ne.s32.totalorder %s149, %s150
      %p162 = scmp.eq.s32.totalorder %s23, 3
      %p163 = por %p161, %p162
      %p165 = scmp.ne.s32.totalorder %s150, %s164
      %p166 = scmp.eq.s32.totalorder %s23, 0
      %p167 = por %p165, %p166
      %p168 = scmp.le.s32.totalorder 1, %s17
      %p169 = scmp.lt.s32.totalorder %s17, 5
      %p170 = pnand %p168, %p169
      %p171 = pneg %p170
      // Predicated region
      $region9: #{tpu_custom_call.1} parent=5 // pred_check
        _
      $region10: #{tpu_custom_call.1} parent=5 // pred_check_branch
        %173 = sbr.rel (%p170) target = $region12
      $region11: #{tpu_custom_call.1} parent=5 // pred_region
        %s174 = ssub.s32 %s17, 1
      $region12: #{tpu_custom_call.1} parent=5 // pred_fallthru
        _
      %p175 = scmp.lt.s32.totalorder %s17, 4
      // Predicated region
      $region13: #{tpu_custom_call.1} parent=5 // pred_check
        %p176 = pneg %p175
      $region14: #{tpu_custom_call.1} parent=5 // pred_check_branch
        %178 = sbr.rel (%p176) target = $region16
      $region15: #{tpu_custom_call.1} parent=5 // pred_region
        // Predicated region
        $region17: #{tpu_custom_call.1} parent=15 // pred_check
          %p179 = pneg %p51
        $region18: #{tpu_custom_call.1} parent=15 // pred_check_branch
          %181 = sbr.rel (%p179) target = $region20
        $region19: #{tpu_custom_call.1} parent=15 // pred_region
          %s182 = sand.u32 %s41, 1
          %s183 = scalar_lea.sflag [#allocation3], %s182
          %s184 = sand.u32 %s41, 1
          %s185 = smul.addr %s184, 16
          %s186 = scalar_lea.vmem [#allocation2], %s185
          %s187 = smul.u32 2, %s25
          %189 = vsyncadd %s183, 0
          %s190 = smul.addr %s24, 4
          %s191 = sadd.s32 %s187, %s190
          %s192 = smul.addr %s191, 8
          %s193 = scalar_lea.hbm %s0, %s192
          %s195 = sshll.u32 %s193, 4
          %s196 = int_to_ptr.hbm [resolvable:$true] %s195
          %s197 = sshll.u32 %s186, 4
          %s198 = int_to_ptr.vmem [resolvable:$true] %s197
          %200 = dma.hbm_to_vmem [thread:$0]  %s196, 256, %s198, %s183
        $region20: #{tpu_custom_call.1} parent=15 // pred_fallthru
          _
        // Predicated region
        $region21: #{tpu_custom_call.1} parent=15 // pred_check
          %p201 = pneg %p79
        $region22: #{tpu_custom_call.1} parent=15 // pred_check_branch
          %203 = sbr.rel (%p201) target = $region24
        $region23: #{tpu_custom_call.1} parent=15 // pred_region
          %s204 = sand.u32 %s17, 1
          %s205 = scalar_lea.sflag [#allocation6], %s204
          %s206 = sand.u32 %s69, 1
          %s207 = smul.addr %s206, 16
          %s208 = scalar_lea.vmem [#allocation5], %s207
          %s209 = smul.u32 2, %s25
          %211 = vsyncadd %s205, 0
          %s212 = smul.addr %s24, 4
          %s213 = sadd.s32 %s209, %s212
          %s214 = smul.addr %s213, 8
          %s215 = scalar_lea.hbm %s1, %s214
          %s217 = sshll.u32 %s215, 4
          %s218 = int_to_ptr.hbm [resolvable:$true] %s217
          %s219 = sshll.u32 %s208, 4
          %s220 = int_to_ptr.vmem [resolvable:$true] %s219
          %222 = dma.hbm_to_vmem [thread:$0]  %s218, 256, %s220, %s205
        $region24: #{tpu_custom_call.1} parent=15 // pred_fallthru
          _
        // Predicated region
        $region25: #{tpu_custom_call.1} parent=15 // pred_check
          %p223 = pneg %p107
        $region26: #{tpu_custom_call.1} parent=15 // pred_check_branch
          %225 = sbr.rel (%p223) target = $region28
        $region27: #{tpu_custom_call.1} parent=15 // pred_region
          %s226 = sand.u32 %s17, 1
          %s227 = scalar_lea.sflag [#allocation6], %s226
          %s228 = sand.u32 %s97, 1
          %s229 = smul.addr %s228, 16
          %s230 = scalar_lea.vmem [#allocation7], %s229
          %s231 = smul.u32 2, %s25
          %233 = vsyncadd %s227, 0
          %s234 = smul.addr %s24, 4
          %s235 = sadd.s32 %s231, %s234
          %s236 = smul.addr %s235, 8
          %s237 = scalar_lea.hbm %s2, %s236
          %s239 = sshll.u32 %s237, 4
          %s240 = int_to_ptr.hbm [resolvable:$true] %s239
          %s241 = sshll.u32 %s230, 4
          %s242 = int_to_ptr.vmem [resolvable:$true] %s241
          %244 = dma.hbm_to_vmem [thread:$0]  %s240, 256, %s242, %s227
        $region28: #{tpu_custom_call.1} parent=15 // pred_fallthru
          _
        // Predicated region
        $region29: #{tpu_custom_call.1} parent=15 // pred_check
          %p245 = pneg %p133
        $region30: #{tpu_custom_call.1} parent=15 // pred_check_branch
          %247 = sbr.rel (%p245) target = $region32
        $region31: #{tpu_custom_call.1} parent=15 // pred_region
          %p248 = scmp.lt.s32.totalorder %s24, 1
          %s249 = scalar_select %p248, %s24, 1
          %s250 = smul.addr %s249, 8
          %s251 = scalar_lea.vmem %s3, %s250
        $region32: #{tpu_custom_call.1} parent=15 // pred_fallthru
          _
      $region16: #{tpu_custom_call.1} parent=5 // pred_fallthru
        _
      %p252 = scmp.le.s32.totalorder 1, %s17
      %p253 = scmp.lt.s32.totalorder %s17, 5
      %p254 = pnand %p252, %p253
      %p255 = pneg %p254
      // Predicated region
      $region33: #{tpu_custom_call.1} parent=5 // pred_check
        _
      $region34: #{tpu_custom_call.1} parent=5 // pred_check_branch
        %257 = sbr.rel (%p254) target = $region36
      $region35: #{tpu_custom_call.1} parent=5 // pred_region
        %s258 = ssub.s32 %s17, 1
        %s259 = sand.u32 %s44, 1
        %s260 = scalar_lea.sflag [#allocation3], %s259
        %s261 = sand.u32 %s44, 1
        %s262 = smul.addr %s261, 16
        %s263 = scalar_lea.vmem [#allocation2], %s262
        // Predicated region
        $region37: #{tpu_custom_call.1} parent=35 // pred_check
          %p264 = pneg %p57
        $region38: #{tpu_custom_call.1} parent=35 // pred_check_branch
          %266 = sbr.rel (%p264) target = $region40
        $region39: #{tpu_custom_call.1} parent=35 // pred_region
          %268 = dma.done %s260, 256
        $region40: #{tpu_custom_call.1} parent=35 // pred_fallthru
          _
        %s269 = sand.u32 %s22, 1
        %s270 = scalar_lea.sflag [#allocation6], %s269
        %s271 = sand.u32 %s72, 1
        %s272 = smul.addr %s271, 16
        %s273 = scalar_lea.vmem [#allocation5], %s272
        // Predicated region
        $region41: #{tpu_custom_call.1} parent=35 // pred_check
          %p274 = pneg %p85
        $region42: #{tpu_custom_call.1} parent=35 // pred_check_branch
          %276 = sbr.rel (%p274) target = $region44
        $region43: #{tpu_custom_call.1} parent=35 // pred_region
          %278 = dma.done %s270, 256
        $region44: #{tpu_custom_call.1} parent=35 // pred_fallthru
          _
        %s279 = sand.u32 %s22, 1
        %s280 = scalar_lea.sflag [#allocation6], %s279
        %s281 = sand.u32 %s100, 1
        %s282 = smul.addr %s281, 16
        %s283 = scalar_lea.vmem [#allocation7], %s282
        // Predicated region
        $region45: #{tpu_custom_call.1} parent=35 // pred_check
          %p284 = pneg %p113
        $region46: #{tpu_custom_call.1} parent=35 // pred_check_branch
          %286 = sbr.rel (%p284) target = $region48
        $region47: #{tpu_custom_call.1} parent=35 // pred_region
          %288 = dma.done %s280, 256
        $region48: #{tpu_custom_call.1} parent=35 // pred_fallthru
          _
        %s289 = sand.u32 %s44, 1
        %s290 = scalar_lea.sflag [#allocation3], %s289
        %s291 = sand.u32 %s44, 1
        %s292 = smul.addr %s291, 16
        %s293 = scalar_lea.vmem [#allocation2], %s292
        %p294 = pneg %p57
        %p295 = pneg %p54
        %s296 = sand.u32 %s22, 1
        %s297 = scalar_lea.sflag [#allocation6], %s296
        %s298 = sand.u32 %s72, 1
        %s299 = smul.addr %s298, 16
        %s300 = scalar_lea.vmem [#allocation5], %s299
        %p301 = pneg %p85
        %p302 = pneg %p82
        %s303 = sand.u32 %s22, 1
        %s304 = scalar_lea.sflag [#allocation6], %s303
        %s305 = sand.u32 %s100, 1
        %s306 = smul.addr %s305, 16
        %s307 = scalar_lea.vmem [#allocation7], %s306
        %p308 = pneg %p113
        %p309 = pneg %p110
        %p310 = scmp.lt.s32.totalorder %s26, 1
        %s311 = scalar_select %p310, %s26, 1
        %s312 = smul.addr %s311, 8
        %s313 = scalar_lea.vmem %s3, %s312
        %p314 = pneg %p139
        %p315 = pneg %p136
        %p316 = pneg %p160
        %p317 = pneg %p157
        %s318 = smul.u32 2, %s27
        %s319 = smul.u32 2, %s27
        %s320 = smul.u32 2, %s27
        %p321 = scmp.lt.s32.totalorder %s26, 1
        %s322 = scalar_select %p321, %s26, 1
        %s323 = smul.addr %s322, 8
        %s324 = scalar_lea.vmem %s3, %s323
        %v325 = vld [vmem:[%s263] sm:$0xff]
        %v326 = vld [vmem:[%s263 + $0x8] sm:$0xff]
        %v327 = vld [vmem:[%s283] sm:$0xff]
        %v328 = vld [vmem:[%s283 + $0x8] sm:$0xff]
        %v329 = vld [vmem:[%s324] sm:$0xff]
        %v330 = vld [vmem:[%s273] sm:$0xff]
        %v331 = vld [vmem:[%s273 + $0x8] sm:$0xff]
        %333 = vset.pattern.permute.xlu0 0
        %334 = vperm.xlu0 %333, %v329
        %v335 = vpop.permute.xlu0 %334
        %v337 = vmul.f32 %v330, %v335
        %v338 = vmul.f32 %v331, %v335
        %v339 = vadd.f32 %v327, 1e-10
        %v340 = vadd.f32 %v328, 1e-10
        %v341 = vlog2.pop %v339
        %v342 = vmul.f32 %v341, 0.6931472
        %v343 = vlog2.pop %v340
        %v344 = vmul.f32 %v343, 0.6931472
        %vm345 = vcmp.lt.f32.partialorder %v339, 8.0
        %vm346 = vcmp.lt.f32.partialorder %v340, 8.0
        %v347 = vmin.f32 %v339, 8.0
        %v348 = vmin.f32 %v340, 8.0
        %v349 = vadd.f32 %v347, 1.0
        %v350 = vadd.f32 %v348, 1.0
        %v351 = vmul.f32 %v347, %v349
        %v352 = vmul.f32 %v348, %v350
        %v353 = vadd.f32 %v347, 2.0
        %v354 = vadd.f32 %v348, 2.0
        %v355 = vmul.f32 %v351, %v353
        %v356 = vmul.f32 %v352, %v354
        %v357 = vadd.f32 %v347, 3.0
        %v358 = vadd.f32 %v348, 3.0
        %v359 = vmul.f32 %v355, %v357
        %v360 = vmul.f32 %v356, %v358
        %v361 = vadd.f32 %v347, 4.0
        %v362 = vadd.f32 %v348, 4.0
        %v363 = vmul.f32 %v359, %v361
        %v364 = vmul.f32 %v360, %v362
        %v365 = vadd.f32 %v347, 5.0
        %v366 = vadd.f32 %v348, 5.0
        %v367 = vmul.f32 %v363, %v365
        %v368 = vmul.f32 %v364, %v366
        %v369 = vadd.f32 %v347, 6.0
        %v370 = vadd.f32 %v348, 6.0
        %v371 = vmul.f32 %v367, %v369
        %v372 = vmul.f32 %v368, %v370
        %v373 = vadd.f32 %v347, 7.0
        %v374 = vadd.f32 %v348, 7.0
        %v375 = vmul.f32 %v371, %v373
        %v376 = vmul.f32 %v372, %v374
        %v377 = vsel %vm345, %v375, 1.0
        %v378 = vsel %vm346, %v376, 1.0
        %v379 = vadd.f32 %v339, 8.0
        %v380 = vadd.f32 %v340, 8.0
        %v381 = vsel %vm345, %v379, %v339
        %v382 = vsel %vm346, %v380, %v340
        %v383 = vrcp.pop %v381
        %v384 = vrcp.pop %v382
        %v385 = vmul.f32 %v383, %v383
        %v386 = vmul.f32 %v384, %v384
        %v387 = vmul.f32 %v385, 0.0007936508
        %v388 = vmul.f32 %v386, 0.0007936508
        %v389 = vsub.f32 0.0027777778, %v387
        %v390 = vsub.f32 0.0027777778, %v388
        %v391 = vmul.f32 %v385, %v389
        %v392 = vmul.f32 %v386, %v390
        %v393 = vsub.f32 0.083333336, %v391
        %v394 = vsub.f32 0.083333336, %v392
        %v395 = vmul.f32 %v383, %v393
        %v396 = vmul.f32 %v384, %v394
        %v397 = vsub.f32 %v381, 0.5
        %v398 = vsub.f32 %v382, 0.5
        %v399 = vlog2.pop %v381
        %v400 = vmul.f32 %v399, 0.6931472
        %v401 = vlog2.pop %v382
        %v402 = vmul.f32 %v401, 0.6931472
        %v403 = vmul.f32 %v397, %v400
        %v404 = vmul.f32 %v398, %v402
        %v405 = vsub.f32 %v403, %v381
        %v406 = vsub.f32 %v404, %v382
        %v407 = vadd.f32 %v405, 0.9189385
        %v408 = vadd.f32 %v406, 0.9189385
        %v409 = vadd.f32 %v407, %v395
        %v410 = vadd.f32 %v408, %v396
        %v411 = vlog2.pop %v377
        %v412 = vmul.f32 %v411, 0.6931472
        %v413 = vlog2.pop %v378
        %v414 = vmul.f32 %v413, 0.6931472
        %v415 = vsub.f32 %v409, %v412
        %v416 = vsub.f32 %v410, %v414
        %v417 = vadd.f32 %v325, 1.0
        %v418 = vadd.f32 %v326, 1.0
        %vm419 = vcmp.lt.f32.partialorder %v417, 8.0
        %vm420 = vcmp.lt.f32.partialorder %v418, 8.0
        %v421 = vmin.f32 %v417, 8.0
        %v422 = vmin.f32 %v418, 8.0
        %v423 = vadd.f32 %v421, 1.0
        %v424 = vadd.f32 %v422, 1.0
        %v425 = vmul.f32 %v421, %v423
        %v426 = vmul.f32 %v422, %v424
        %v427 = vadd.f32 %v421, 2.0
        %v428 = vadd.f32 %v422, 2.0
        %v429 = vmul.f32 %v425, %v427
        %v430 = vmul.f32 %v426, %v428
        %v431 = vadd.f32 %v421, 3.0
        %v432 = vadd.f32 %v422, 3.0
        %v433 = vmul.f32 %v429, %v431
        %v434 = vmul.f32 %v430, %v432
        %v435 = vadd.f32 %v421, 4.0
        %v436 = vadd.f32 %v422, 4.0
        %v437 = vmul.f32 %v433, %v435
        %v438 = vmul.f32 %v434, %v436
        %v439 = vadd.f32 %v421, 5.0
        %v440 = vadd.f32 %v422, 5.0
        %v441 = vmul.f32 %v437, %v439
        %v442 = vmul.f32 %v438, %v440
        %v443 = vadd.f32 %v421, 6.0
        %v444 = vadd.f32 %v422, 6.0
        %v445 = vmul.f32 %v441, %v443
        %v446 = vmul.f32 %v442, %v444
        %v447 = vadd.f32 %v421, 7.0
        %v448 = vadd.f32 %v422, 7.0
        %v449 = vmul.f32 %v445, %v447
        %v450 = vmul.f32 %v446, %v448
        %v451 = vsel %vm419, %v449, 1.0
        %v452 = vsel %vm420, %v450, 1.0
        %v453 = vadd.f32 %v417, 8.0
        %v454 = vadd.f32 %v418, 8.0
        %v455 = vsel %vm419, %v453, %v417
        %v456 = vsel %vm420, %v454, %v418
        %v457 = vrcp.pop %v455
        %v458 = vrcp.pop %v456
        %v459 = vmul.f32 %v457, %v457
        %v460 = vmul.f32 %v458, %v458
        %v461 = vmul.f32 %v459, 0.0007936508
        %v462 = vmul.f32 %v460, 0.0007936508
        %v463 = vsub.f32 0.0027777778, %v461
        %v464 = vsub.f32 0.0027777778, %v462
        %v465 = vmul.f32 %v459, %v463
        %v466 = vmul.f32 %v460, %v464
        %v467 = vsub.f32 0.083333336, %v465
        %v468 = vsub.f32 0.083333336, %v466
        %v469 = vmul.f32 %v457, %v467
        %v470 = vmul.f32 %v458, %v468
        %v471 = vsub.f32 %v455, 0.5
        %v472 = vsub.f32 %v456, 0.5
        %v473 = vlog2.pop %v455
        %v474 = vmul.f32 %v473, 0.6931472
        %v475 = vlog2.pop %v456
        %v476 = vmul.f32 %v475, 0.6931472
        %v477 = vmul.f32 %v471, %v474
        %v478 = vmul.f32 %v472, %v476
        %v479 = vsub.f32 %v477, %v455
        %v480 = vsub.f32 %v478, %v456
        %v481 = vadd.f32 %v479, 0.9189385
        %v482 = vadd.f32 %v480, 0.9189385
        %v483 = vadd.f32 %v481, %v469
        %v484 = vadd.f32 %v482, %v470
        %v485 = vlog2.pop %v451
        %v486 = vmul.f32 %v485, 0.6931472
        %v487 = vlog2.pop %v452
        %v488 = vmul.f32 %v487, 0.6931472
        %v489 = vsub.f32 %v483, %v486
        %v490 = vsub.f32 %v484, %v488
        %v491 = vadd.f32 %v415, %v489
        %v492 = vadd.f32 %v416, %v490
        %v493 = vadd.f32 %v325, %v339
        %v494 = vadd.f32 %v326, %v340
        %vm495 = vcmp.lt.f32.partialorder %v493, 8.0
        %vm496 = vcmp.lt.f32.partialorder %v494, 8.0
        %v497 = vmin.f32 %v493, 8.0
        %v498 = vmin.f32 %v494, 8.0
        %v499 = vadd.f32 %v497, 1.0
        %v500 = vadd.f32 %v498, 1.0
        %v501 = vmul.f32 %v497, %v499
        %v502 = vmul.f32 %v498, %v500
        %v503 = vadd.f32 %v497, 2.0
        %v504 = vadd.f32 %v498, 2.0
        %v505 = vmul.f32 %v501, %v503
        %v506 = vmul.f32 %v502, %v504
        %v507 = vadd.f32 %v497, 3.0
        %v508 = vadd.f32 %v498, 3.0
        %v509 = vmul.f32 %v505, %v507
        %v510 = vmul.f32 %v506, %v508
        %v511 = vadd.f32 %v497, 4.0
        %v512 = vadd.f32 %v498, 4.0
        %v513 = vmul.f32 %v509, %v511
        %v514 = vmul.f32 %v510, %v512
        %v515 = vadd.f32 %v497, 5.0
        %v516 = vadd.f32 %v498, 5.0
        %v517 = vmul.f32 %v513, %v515
        %v518 = vmul.f32 %v514, %v516
        %v519 = vadd.f32 %v497, 6.0
        %v520 = vadd.f32 %v498, 6.0
        %v521 = vmul.f32 %v517, %v519
        %v522 = vmul.f32 %v518, %v520
        %v523 = vadd.f32 %v497, 7.0
        %v524 = vadd.f32 %v498, 7.0
        %v525 = vmul.f32 %v521, %v523
        %v526 = vmul.f32 %v522, %v524
        %v527 = vsel %vm495, %v525, 1.0
        %v528 = vsel %vm496, %v526, 1.0
        %v529 = vadd.f32 %v493, 8.0
        %v530 = vadd.f32 %v494, 8.0
        %v531 = vsel %vm495, %v529, %v493
        %v532 = vsel %vm496, %v530, %v494
        %v533 = vrcp.pop %v531
        %v534 = vrcp.pop %v532
        %v535 = vmul.f32 %v533, %v533
        %v536 = vmul.f32 %v534, %v534
        %v537 = vmul.f32 %v535, 0.0007936508
        %v538 = vmul.f32 %v536, 0.0007936508
        %v539 = vsub.f32 0.0027777778, %v537
        %v540 = vsub.f32 0.0027777778, %v538
        %v541 = vmul.f32 %v535, %v539
        %v542 = vmul.f32 %v536, %v540
        %v543 = vsub.f32 0.083333336, %v541
        %v544 = vsub.f32 0.083333336, %v542
        %v545 = vmul.f32 %v533, %v543
        %v546 = vmul.f32 %v534, %v544
        %v547 = vsub.f32 %v531, 0.5
        %v548 = vsub.f32 %v532, 0.5
        %v549 = vlog2.pop %v531
        %v550 = vmul.f32 %v549, 0.6931472
        %v551 = vlog2.pop %v532
        %v552 = vmul.f32 %v551, 0.6931472
        %v553 = vmul.f32 %v547, %v550
        %v554 = vmul.f32 %v548, %v552
        %v555 = vsub.f32 %v553, %v531
        %v556 = vsub.f32 %v554, %v532
        %v557 = vadd.f32 %v555, 0.9189385
        %v558 = vadd.f32 %v556, 0.9189385
        %v559 = vadd.f32 %v557, %v545
        %v560 = vadd.f32 %v558, %v546
        %v561 = vlog2.pop %v527
        %v562 = vmul.f32 %v561, 0.6931472
        %v563 = vlog2.pop %v528
        %v564 = vmul.f32 %v563, 0.6931472
        %v565 = vsub.f32 %v559, %v562
        %v566 = vsub.f32 %v560, %v564
        %v567 = vsub.f32 %v491, %v565
        %v568 = vsub.f32 %v492, %v566
        %v569 = vadd.f32 %v327, %v325
        %v570 = vadd.f32 %v328, %v326
        %v571 = vadd.f32 %v337, %v339
        %v572 = vadd.f32 %v338, %v340
        %v573 = vlog2.pop %v571
        %v574 = vmul.f32 %v573, 0.6931472
        %v575 = vlog2.pop %v572
        %v576 = vmul.f32 %v575, 0.6931472
        %v577 = vsub.f32 %v574, %v342
        %v578 = vsub.f32 %v576, %v344
        %v579 = vmul.f32 %v569, %v577
        %v580 = vmul.f32 %v570, %v578
        %v581 = vadd.f32 %v337, 1e-10
        %v582 = vadd.f32 %v338, 1e-10
        %v583 = vlog2.pop %v581
        %v584 = vmul.f32 %v583, 0.6931472
        %v585 = vlog2.pop %v582
        %v586 = vmul.f32 %v585, 0.6931472
        %v587 = vsub.f32 %v342, %v584
        %v588 = vsub.f32 %v344, %v586
        %v589 = vmul.f32 %v325, %v587
        %v590 = vmul.f32 %v326, %v588
        %v591 = vadd.f32 %v579, %v589
        %v592 = vadd.f32 %v580, %v590
        %v593 = vadd.f32 %v567, %v591
        %v594 = vadd.f32 %v568, %v592
        %v595 = vadd.f32 %v593, %v594
        %596 = vadd.xlane.f32.xlu0 %v595
        %v597 = vpop.xlane.xlu0 %596
        %v598 = vrot.slane %v597, 4
        %v599 = vadd.f32 %v597, %v598
        %v600 = vrot.slane %v599, 2
        %v601 = vadd.f32 %v599, %v600
        %v602 = vrot.slane %v601, 1
        %v603 = vadd.f32 %v601, %v602
        %s604 = vtos %v603
        %p605 = scmp.eq.s32.totalorder %s27, 0
        // Predicated region
        $region49: #{tpu_custom_call.1} parent=35 // pred_check
          %p606 = pneg %p605
        $region50: #{tpu_custom_call.1} parent=35 // pred_check_branch
          %608 = sbr.rel (%p606) target = $region52
        $region51: #{tpu_custom_call.1} parent=35 // pred_region
          %s609 = scalar_lea.smem [#allocation8], %s26
          %610 = sst [smem:[%s609]] 0.0
        $region52: #{tpu_custom_call.1} parent=35 // pred_fallthru
          _
        %s611 = sld [smem:[#allocation8 + %s26]]
        %s612 = sadd.f32 %s611, %s604
        %s613 = scalar_lea.smem [#allocation8], %s26
        %614 = sst [smem:[%s613]] %s612
        // Predicated region
        $region53: #{tpu_custom_call.1} parent=35 // pred_check
          %p615 = pneg %p157
        $region54: #{tpu_custom_call.1} parent=35 // pred_check_branch
          %617 = sbr.rel (%p615) target = $region56
        $region55: #{tpu_custom_call.1} parent=35 // pred_region
          %619 = vsyncadd [#allocation4], 0
          %s621 = sshll.u32 %s4, 4
          %s622 = int_to_ptr.hbm [resolvable:$true] %s621
          %624 = dma.smem_to_hbm [#allocation8], 16, %s622, [#allocation4]
        $region56: #{tpu_custom_call.1} parent=35 // pred_fallthru
          _
        // Predicated region
        $region57: #{tpu_custom_call.1} parent=35 // pred_check
          %p625 = pneg %p157
        $region58: #{tpu_custom_call.1} parent=35 // pred_check_branch
          %627 = sbr.rel (%p625) target = $region60
        $region59: #{tpu_custom_call.1} parent=35 // pred_region
          %629 = dma.done [#allocation4], 16
        $region60: #{tpu_custom_call.1} parent=35 // pred_fallthru
          _
        %630 = sfence
      $region36: #{tpu_custom_call.1} parent=5 // pred_fallthru
        _
      %p631 = scmp.le.s32.totalorder 2, %s17
      // Predicated region
      $region61: #{tpu_custom_call.1} parent=5 // pred_check
        %p632 = pneg %p631
      $region62: #{tpu_custom_call.1} parent=5 // pred_check_branch
        %634 = sbr.rel (%p632) target = $region64
      $region63: #{tpu_custom_call.1} parent=5 // pred_region
        %s635 = ssub.s32 %s17, 2
      $region64: #{tpu_custom_call.1} parent=5 // pred_fallthru
        _
    $region6: #{tpu_custom_call.1} parent=1 // loop_footer
      %s21 = sadd.s32 1, %s17
    $region7: #{tpu_custom_call.1} parent=1 // loop_footer_branch
      %16 = sbr.rel target = $region3
    $region8: #{tpu_custom_call.1} parent=1 // loop_exit
      _
    %636 = vsyncpa [#allocation3], 1
    %s637 = scalar_lea.sflag [#allocation3], 1
    %638 = vsyncpa %s637, 1
    %639 = vsyncpa [#allocation6], 1
    %s640 = scalar_lea.sflag [#allocation6], 1
    %641 = vsyncpa %s640, 1
    %642 = vsyncpa [#allocation4], 1
    %s643 = scalar_lea.sflag [#allocation4], 1
    %644 = vsyncpa %s643, 1

</llo_original>
